<compile_context>
chip_gen: v7x
topology: tpu7x:2x2x1
jax: 0.10.0
libtpu: 0.0.40
codegen_flags: <defaults>
</compile_context>

<pallas_src>
import jax
import jax.numpy as jnp
import numpy as np
from jax.experimental import pallas as pl
from jax.experimental.pallas import tpu as pltpu


def _neural_lin_output_kernel(x_ref, w1_ref, b1_ref, w2_ref, b2_ref, o_ref):
    """One batch tile: y = tanh(x @ W1 + b1) @ W2 + b2.

    bf16 MXU operands, f32 accumulation, f32 elementwise (tanh, bias adds).
    """
    xb = x_ref[...].astype(jnp.bfloat16)
    w1b = w1_ref[...].astype(jnp.bfloat16)
    h = jnp.tanh(
        jnp.dot(xb, w1b, preferred_element_type=jnp.float32)
        + b1_ref[...].astype(jnp.float32)
    )
    w2b = w2_ref[...].astype(jnp.bfloat16)
    y = (
        jnp.dot(h.astype(jnp.bfloat16), w2b, preferred_element_type=jnp.float32)
        + b2_ref[...].astype(jnp.float32)
    )
    o_ref[...] = y.astype(o_ref.dtype)


def _round_up(n, m):
    return ((n + m - 1) // m) * m


def neural_lin_output_forward(x, w1, b1, w2, b2, *, block_b=1024):
    """x: (B, n_x), w1: (n_x, H), b1: (1, H) or (H,), w2: (H, n_y), b2: (1, n_y) or (n_y,).

    Returns y: (B, n_y) = tanh(x @ w1 + b1) @ w2 + b2.
    Weights are stored transposed as (in, out); biases as (1, out) rows.
    """
    B, n_x = x.shape
    n_h = w1.shape[1]
    n_y = w2.shape[1]
    if b1.ndim == 1:
        b1 = b1.reshape(1, n_h)
    if b2.ndim == 1:
        b2 = b2.reshape(1, n_y)

    # Batch tile: multiple of 8 sublanes.  No feature-dim padding: blocks whose
    # last dim equals the full array dim are legal even off the 128 grid, and
    # the partial last batch block (grid = cdiv) is handled by masked stores.
    tb = min(block_b, _round_up(B, 8))
    # v7x has 2 TensorCores: keep >= 2 grid steps for non-trivial batches so
    # the "parallel" batch axis can shard across both cores.
    if B > 8 and tb >= _round_up(B, 8):
        tb = _round_up((B + 1) // 2, 8)
    grid = (pl.cdiv(B, tb),)

    return pl.pallas_call(
        _neural_lin_output_kernel,
        out_shape=jax.ShapeDtypeStruct((B, n_y), x.dtype),
        grid_spec=pltpu.PrefetchScalarGridSpec(
            num_scalar_prefetch=0,
            grid=grid,
            in_specs=[
                pl.BlockSpec((tb, n_x), lambda i: (i, 0)),   # x tile: pipelined
                pl.BlockSpec((n_x, n_h), lambda i: (0, 0)),  # weights: VMEM-resident
                pl.BlockSpec((1, n_h), lambda i: (0, 0)),
                pl.BlockSpec((n_h, n_y), lambda i: (0, 0)),
                pl.BlockSpec((1, n_y), lambda i: (0, 0)),
            ],
            out_specs=pl.BlockSpec((tb, n_y), lambda i: (i, 0)),
        ),
        compiler_params=pltpu.CompilerParams(
            dimension_semantics=("parallel",),
        ),
    )(x, w1, b1, w2, b2)


def reference_forward(x, w1, b1, w2, b2):
    """Pure-JAX f32 reference of NeuralLinOutput.forward for verification."""
    h = jnp.tanh(x @ w1 + b1)
    return h @ w2 + b2


if __name__ == "__main__":
    # NeuralLinOutput(n_x=32, n_y=8, hidden_size=16)
    n_x, n_y, hidden = 32, 8, 16
    batch = 8
    dtype = jnp.float32

    key = jax.random.PRNGKey(0)
    kx, k1, kb1, k2, kb2 = jax.random.split(key, 5)

    x = jax.random.normal(kx, (batch, n_x), dtype)
    # Deterministic init mimicking torch Linear's U(-1/sqrt(fan_in), 1/sqrt(fan_in)).
    # Weights stored transposed as (in, out); biases as (1, out).
    w1 = jax.random.uniform(k1, (n_x, hidden), dtype, -1.0, 1.0) / jnp.sqrt(float(n_x))
    b1 = jax.random.uniform(kb1, (1, hidden), dtype, -1.0, 1.0) / jnp.sqrt(float(n_x))
    w2 = jax.random.uniform(k2, (hidden, n_y), dtype, -1.0, 1.0) / jnp.sqrt(float(hidden))
    b2 = jax.random.uniform(kb2, (1, n_y), dtype, -1.0, 1.0) / jnp.sqrt(float(hidden))

    y = jax.block_until_ready(neural_lin_output_forward(x, w1, b1, w2, b2))

    y_ref = reference_forward(x, w1, b1, w2, b2)
    # bf16 MXU operands (f32 accumulation) vs. pure-f32 reference -> loosened
    # tolerance; outputs are O(1) so 2e-2 abs/rel is comfortably above the
    # ~1e-3 bf16 rounding error and far below any real bug.
    np.testing.assert_allclose(np.asarray(y), np.asarray(y_ref), rtol=2e-2, atol=2e-2)
    assert y.shape == (batch, n_y)

    print("KERNEL_OK")
</pallas_src>

<mosaic_0001>
module attributes {stable_mosaic.version = 11 : i64} {
  func.func @_neural_lin_output_kernel(%arg0: i32, %arg1: memref<8x32xf32, #tpu.memory_space<vmem>>, %arg2: memref<32x16xf32, #tpu.memory_space<vmem>>, %arg3: memref<1x16xf32, #tpu.memory_space<vmem>>, %arg4: memref<16x8xf32, #tpu.memory_space<vmem>>, %arg5: memref<1x8xf32, #tpu.memory_space<vmem>>, %arg6: memref<8x8xf32, #tpu.memory_space<vmem>>) attributes {dimension_semantics = [#tpu.dimension_semantics<parallel>], iteration_bounds = array<i64: 1>, scalar_prefetch = 0 : i64, scratch_operands = 0 : i64, tpu.core_type = #tpu.core_type<tc>, window_params = [{transform_indices = @transform_0, window_bounds = array<i64: 8, 32>}, {pipeline_mode = #tpu.pipeline_mode<synchronous>, transform_indices = @transform_1, window_bounds = array<i64: 32, 16>}, {pipeline_mode = #tpu.pipeline_mode<synchronous>, transform_indices = @transform_2, window_bounds = array<i64: 1, 16>}, {pipeline_mode = #tpu.pipeline_mode<synchronous>, transform_indices = @transform_3, window_bounds = array<i64: 16, 8>}, {pipeline_mode = #tpu.pipeline_mode<synchronous>, transform_indices = @transform_4, window_bounds = array<i64: 1, 8>}, {transform_indices = @transform_5, window_bounds = array<i64: 8, 8>}]} {
    %c0 = arith.constant 0 : index
    %c0_0 = arith.constant 0 : index
    %0 = vector.load %arg1[%c0, %c0_0] : memref<8x32xf32, #tpu.memory_space<vmem>>, vector<8x32xf32>
    %1 = arith.truncf %0 : vector<8x32xf32> to vector<8x32xbf16>
    %c0_1 = arith.constant 0 : index
    %c0_2 = arith.constant 0 : index
    %2 = vector.load %arg2[%c0_1, %c0_2] : memref<32x16xf32, #tpu.memory_space<vmem>>, vector<32x16xf32>
    %3 = arith.truncf %2 : vector<32x16xf32> to vector<32x16xbf16>
    %cst = arith.constant dense<0.000000e+00> : vector<8x16xf32>
    %4 = tpu.matmul %1, %3, %cst {dimension_numbers = #tpu.dot_dimension_numbers<[1], [0], [0], [1], [0, 0, 1, 1], [], []>} : vector<8x32xbf16>, vector<32x16xbf16>, vector<8x16xf32> -> vector<8x16xf32>
    %c0_3 = arith.constant 0 : index
    %c0_4 = arith.constant 0 : index
    %5 = vector.load %arg3[%c0_3, %c0_4] : memref<1x16xf32, #tpu.memory_space<vmem>>, vector<1x16xf32>
    %6 = vector.broadcast %5 : vector<1x16xf32> to vector<8x16xf32>
    %7 = arith.addf %4, %6 : vector<8x16xf32>
    %8 = math.tanh %7 : vector<8x16xf32>
    %c0_5 = arith.constant 0 : index
    %c0_6 = arith.constant 0 : index
    %9 = vector.load %arg4[%c0_5, %c0_6] : memref<16x8xf32, #tpu.memory_space<vmem>>, vector<16x8xf32>
    %10 = arith.truncf %9 : vector<16x8xf32> to vector<16x8xbf16>
    %11 = arith.truncf %8 : vector<8x16xf32> to vector<8x16xbf16>
    %cst_7 = arith.constant dense<0.000000e+00> : vector<8x8xf32>
    %12 = tpu.matmul %11, %10, %cst_7 {dimension_numbers = #tpu.dot_dimension_numbers<[1], [0], [0], [1], [0, 0, 1, 1], [], []>} : vector<8x16xbf16>, vector<16x8xbf16>, vector<8x8xf32> -> vector<8x8xf32>
    %c0_8 = arith.constant 0 : index
    %c0_9 = arith.constant 0 : index
    %13 = vector.load %arg5[%c0_8, %c0_9] : memref<1x8xf32, #tpu.memory_space<vmem>>, vector<1x8xf32>
    %14 = vector.broadcast %13 : vector<1x8xf32> to vector<8x8xf32>
    %15 = arith.addf %12, %14 : vector<8x8xf32>
    %c0_10 = arith.constant 0 : index
    %c0_11 = arith.constant 0 : index
    %16 = vector.load %arg6[%c0_10, %c0_11] : memref<8x8xf32, #tpu.memory_space<vmem>>, vector<8x8xf32>
    tpu.vector_store %arg6[%c0_10, %c0_11], %15 {strides = array<i32>} : memref<8x8xf32, #tpu.memory_space<vmem>>, vector<8x8xf32>,
    return
  }
  func.func @transform_0(%arg0: i32) -> (i32, i32) {
    %c0_i32 = arith.constant 0 : i32
    %c0_i32_0 = arith.constant 0 : i32
    return %arg0, %c0_i32 : i32, i32
  }
  func.func @transform_1(%arg0: i32) -> (i32, i32) {
    %c0_i32 = arith.constant 0 : i32
    %c0_i32_0 = arith.constant 0 : i32
    %c0_i32_1 = arith.constant 0 : i32
    return %c0_i32, %c0_i32_0 : i32, i32
  }
  func.func @transform_2(%arg0: i32) -> (i32, i32) {
    %c0_i32 = arith.constant 0 : i32
    %c0_i32_0 = arith.constant 0 : i32
    %c0_i32_1 = arith.constant 0 : i32
    return %c0_i32, %c0_i32_0 : i32, i32
  }
  func.func @transform_3(%arg0: i32) -> (i32, i32) {
    %c0_i32 = arith.constant 0 : i32
    %c0_i32_0 = arith.constant 0 : i32
    %c0_i32_1 = arith.constant 0 : i32
    return %c0_i32, %c0_i32_0 : i32, i32
  }
  func.func @transform_4(%arg0: i32) -> (i32, i32) {
    %c0_i32 = arith.constant 0 : i32
    %c0_i32_0 = arith.constant 0 : i32
    %c0_i32_1 = arith.constant 0 : i32
    return %c0_i32, %c0_i32_0 : i32, i32
  }
  func.func @transform_5(%arg0: i32) -> (i32, i32) {
    %c0_i32 = arith.constant 0 : i32
    %c0_i32_0 = arith.constant 0 : i32
    return %arg0, %c0_i32 : i32, i32
  }
}

</mosaic_0001>

<llo_original>
// kernel: tpu_custom_call.1
$region0: #{tpu_custom_call.1}
  #allocation0 [shape = 'u32[]', space=smem, size = 0x4, offset = 0x4, fixed_abs, tag = 'smem constant byte address 0x4 - core index']
  #allocation1 [shape = 'u32[144,128]{1,0:T(1,128)}', space=vmem, size = 0x12000, scoped, tag = 'internal scratch']
  %s0 = inlined_call_operand.vmem [shape: f32[8,32], index: 0, kind: input, shape index: {}]
  %s1 = inlined_call_operand.vmem [shape: f32[32,16], index: 1, kind: input, shape index: {}]
  %s2 = inlined_call_operand.vmem [shape: f32[1,16], index: 2, kind: input, shape index: {}]
  %s3 = inlined_call_operand.vmem [shape: f32[16,8], index: 3, kind: input, shape index: {}]
  %s4 = inlined_call_operand.vmem [shape: f32[1,8], index: 4, kind: input, shape index: {}]
  %s5 = inlined_call_operand.hbm [shape: f32[8,8], index: 5, kind: output, shape index: {}]
  %s6 = sld [smem:[#allocation0]]
  $region30: #{tpu_custom_call.1} parent=0
    _
  %s8 = ssub.s32 1, %s6
  %s9 = scalar_select 0, %s8, %s6
  $region1: #{tpu_custom_call.1} parent=0
    #allocation2 [shape = 'u8[4096]{0}', space=vmem, size = 0x1000, scoped, tag = 'output window, operand 0, single buffered']
    #allocation3 [shape = 's32[1]{0}', space=sflag, size = 0x4, scoped, tag = 'scoped memory for tpu_custom_call.1']
    %10 = vsyncpa [#allocation3], 0
    // Predicated region
    $region2: #{tpu_custom_call.1} parent=1 // pred_check
      _
    $region3: #{tpu_custom_call.1} parent=1 // pred_check_branch
      %12 = sbr.rel (0) target = $region5
    $region4: #{tpu_custom_call.1} parent=1 // pred_region
      _
    $region5: #{tpu_custom_call.1} parent=1 // pred_fallthru
      _
    // Predicated region
    $region6: #{tpu_custom_call.1} parent=1 // pred_check
      _
    $region7: #{tpu_custom_call.1} parent=1 // pred_check_branch
      %14 = sbr.rel (0) target = $region9
    $region8: #{tpu_custom_call.1} parent=1 // pred_region
      _
    $region9: #{tpu_custom_call.1} parent=1 // pred_fallthru
      _
    // Predicated region
    $region10: #{tpu_custom_call.1} parent=1 // pred_check
      _
    $region11: #{tpu_custom_call.1} parent=1 // pred_check_branch
      %16 = sbr.rel (0) target = $region13
    $region12: #{tpu_custom_call.1} parent=1 // pred_region
      _
    $region13: #{tpu_custom_call.1} parent=1 // pred_fallthru
      _
    // Predicated region
    $region14: #{tpu_custom_call.1} parent=1 // pred_check
      _
    $region15: #{tpu_custom_call.1} parent=1 // pred_check_branch
      %18 = sbr.rel (0) target = $region17
    $region16: #{tpu_custom_call.1} parent=1 // pred_region
      _
    $region17: #{tpu_custom_call.1} parent=1 // pred_fallthru
      _
    // Predicated region
    $region18: #{tpu_custom_call.1} parent=1 // pred_check
      _
    $region19: #{tpu_custom_call.1} parent=1 // pred_check_branch
      %20 = sbr.rel (0) target = $region21
    $region20: #{tpu_custom_call.1} parent=1 // pred_region
      _
    $region21: #{tpu_custom_call.1} parent=1 // pred_fallthru
      _
    %v22 = vld [vmem:[%s0] sm:$0xff]
    %v23 = vpack.c.bf16 %v22, %v22
    %v24 = vld [vmem:[%s1] sm:$0xff]
    %v25 = vld [vmem:[%s1 + $0x8] sm:$0xff]
    %v26 = vld [vmem:[%s1 + $0x10] sm:$0xff]
    %v27 = vld [vmem:[%s1 + $0x18] sm:$0xff]
    %v28 = vpack.c.bf16 %v25, %v24
    %v29 = vpack.c.bf16 %v27, %v26
    %v30 = vld [vmem:[%s2] sm:$0x1]
    %v32 = vlaneseq
    %v33 = vshrl.u32 %v32, 7
    %v34 = vsub.s32 0, %v33
    %v35 = vrot.slane %v30, %v34
    %vm37 = vcmask 261120
    %v39 = vsel %vm37, %v23, 0
    %41 = vmatprep.subr.bf16.mxu0 0
    %42 = vmatpush1.bf16.msra.mxu0 %v28
    %43 = vmatprep.subr.bf16.mxu0 0
    %44 = vmatpush1.bf16.msra.mxu0 %v29
    %45 = vmatprep.subr.bf16.mxu0 0
    %46 = vmatpush1.bf16.msra.mxu0 0
    %47 = vmatprep.subr.bf16.mxu0 0
    %48 = vmatpush1.bf16.msra.mxu0 0
    %49 = vmatprep.subr.bf16.mxu0 0
    %50 = vmatpush1.bf16.msra.mxu0 0
    %51 = vmatprep.subr.bf16.mxu0 0
    %52 = vmatpush1.bf16.msra.mxu0 0
    %53 = vmatprep.subr.bf16.mxu0 0
    %54 = vmatpush1.bf16.msra.mxu0 0
    %55 = vmatprep.subr.bf16.mxu0 0
    %56 = vmatpush1.bf16.msra.mxu0 0
    %57 = vmatprep.subr.bf16.mxu0 0
    %58 = vmatpush1.bf16.msra.mxu0 0
    %59 = vmatprep.subr.bf16.mxu0 0
    %60 = vmatpush1.bf16.msra.mxu0 0
    %61 = vmatprep.subr.bf16.mxu0 0
    %62 = vmatpush1.bf16.msra.mxu0 0
    %63 = vmatprep.subr.bf16.mxu0 0
    %64 = vmatpush1.bf16.msra.mxu0 0
    %65 = vmatprep.subr.bf16.mxu0 0
    %66 = vmatpush1.bf16.msra.mxu0 0
    %67 = vmatprep.subr.bf16.mxu0 0
    %68 = vmatpush1.bf16.msra.mxu0 0
    %69 = vmatprep.subr.bf16.mxu0 0
    %70 = vmatpush1.bf16.msra.mxu0 0
    %71 = vmatprep.subr.bf16.mxu0 0
    %72 = vmatpush1.bf16.msra.mxu0 0
    %73 = vmatprep.mubr.bf16.mxu0 0
    %74 = vmatmul.mubr.bf16.gmra.mrb[0].mxu0 %v39
    %v75 = vpop.f32.mrb[0].mxu0
    %v76 = vadd.f32 %v35, %v75
    %v77 = vpop.f32.mrb[0].mxu0
    %v78 = vpop.f32.mrb[0].mxu0
    %v79 = vpop.f32.mrb[0].mxu0
    %80 = vdwg.mxu0
    %v81 = vtanh.pop %v76
    %v82 = vld [vmem:[%s3] sm:$0xff]
    %v83 = vld [vmem:[%s3 + $0x8] sm:$0xff]
    %v84 = vpack.c.bf16 %v83, %v82
    %v85 = vpack.c.bf16 %v81, %v81
    %v86 = vld [vmem:[%s4] sm:$0x1]
    %v88 = vlaneseq
    %v89 = vshrl.u32 %v88, 7
    %v90 = vsub.s32 0, %v89
    %v91 = vrot.slane %v86, %v90
    %vm93 = vcmask 130048
    %v95 = vsel %vm93, %v85, 0
    %97 = vmatprep.subr.bf16.mxu0 0
    %98 = vmatpush1.bf16.msra.mxu0 %v84
    %99 = vmatprep.subr.bf16.mxu0 0
    %100 = vmatpush1.bf16.msra.mxu0 0
    %101 = vmatprep.subr.bf16.mxu0 0
    %102 = vmatpush1.bf16.msra.mxu0 0
    %103 = vmatprep.subr.bf16.mxu0 0
    %104 = vmatpush1.bf16.msra.mxu0 0
    %105 = vmatprep.subr.bf16.mxu0 0
    %106 = vmatpush1.bf16.msra.mxu0 0
    %107 = vmatprep.subr.bf16.mxu0 0
    %108 = vmatpush1.bf16.msra.mxu0 0
    %109 = vmatprep.subr.bf16.mxu0 0
    %110 = vmatpush1.bf16.msra.mxu0 0
    %111 = vmatprep.subr.bf16.mxu0 0
    %112 = vmatpush1.bf16.msra.mxu0 0
    %113 = vmatprep.subr.bf16.mxu0 0
    %114 = vmatpush1.bf16.msra.mxu0 0
    %115 = vmatprep.subr.bf16.mxu0 0
    %116 = vmatpush1.bf16.msra.mxu0 0
    %117 = vmatprep.subr.bf16.mxu0 0
    %118 = vmatpush1.bf16.msra.mxu0 0
    %119 = vmatprep.subr.bf16.mxu0 0
    %120 = vmatpush1.bf16.msra.mxu0 0
    %121 = vmatprep.subr.bf16.mxu0 0
    %122 = vmatpush1.bf16.msra.mxu0 0
    %123 = vmatprep.subr.bf16.mxu0 0
    %124 = vmatpush1.bf16.msra.mxu0 0
    %125 = vmatprep.subr.bf16.mxu0 0
    %126 = vmatpush1.bf16.msra.mxu0 0
    %127 = vmatprep.subr.bf16.mxu0 0
    %128 = vmatpush1.bf16.msra.mxu0 0
    %129 = vmatprep.mubr.bf16.mxu0 0
    %130 = vmatmul.mubr.bf16.gmra.mrb[0].mxu0 %v95
    %v131 = vpop.f32.mrb[0].mxu0
    %v132 = vadd.f32 %v91, %v131
    %v133 = vpop.f32.mrb[0].mxu0
    %v134 = vpop.f32.mrb[0].mxu0
    %v135 = vpop.f32.mrb[0].mxu0
    %136 = vdwg.mxu0
    %vm137 = vcmask 64512
    %138 = vst.msk [vmem:[#allocation2] sm:$0xff] %vm137, %v132
    // Predicated region
    $region22: #{tpu_custom_call.1} parent=1 // pred_check
      _
    $region23: #{tpu_custom_call.1} parent=1 // pred_check_branch
      %140 = sbr.rel (0) target = $region25
    $region24: #{tpu_custom_call.1} parent=1 // pred_region
      %s142 = ssub.s32 128, 128
      %143 = vsyncadd [#allocation3], %s142
      %s145 = sshll.u32 [#allocation2], 4
      %s146 = int_to_ptr.vmem [resolvable:$true] %s145
      %148 = dma.vmem_to_hbm [thread:$0]  %s146, 128, %s5, [#allocation3]
    $region25: #{tpu_custom_call.1} parent=1 // pred_fallthru
      _
    // Predicated region
    $region26: #{tpu_custom_call.1} parent=1 // pred_check
      _
    $region27: #{tpu_custom_call.1} parent=1 // pred_check_branch
      %150 = sbr.rel (0) target = $region29
    $region28: #{tpu_custom_call.1} parent=1 // pred_region
      %151 = dma.done [#allocation3], 128
    $region29: #{tpu_custom_call.1} parent=1 // pred_fallthru
      _
    %152 = vsyncpa [#allocation3], 1

</llo_original>
